<compile_context>
chip_gen: v6e
topology: v6e:2x2x1
jax: 0.10.0
libtpu: 0.0.40
codegen_flags: <defaults>
</compile_context>

<pallas_src>
import functools

import jax
import jax.numpy as jnp
from jax.experimental import pallas as pl
from jax.experimental.pallas import tpu as pltpu


# ---------------------------------------------------------------------------
# Sizing helpers
# ---------------------------------------------------------------------------

def _round_up(x, m):
    return -(-x // m) * m


def _vmem_capacity_bytes():
    """Physical VMEM per TensorCore; conservative (v7x-sized) fallback."""
    try:
        cap = int(pltpu.get_tpu_info().vmem_capacity_bytes)
        if cap > 0:
            return cap
    except Exception:
        pass
    return 64 * 1024 * 1024


# ---------------------------------------------------------------------------
# Kernels
# ---------------------------------------------------------------------------

def _pam_fused_kernel(x_ref, o_ref, *, alpha, compute_dtype):
    """Single pass. Block = (tm, HW): full spatial row per (b, c)."""
    x = jnp.maximum(x_ref[...].astype(compute_dtype), 0.0)       # ReLU
    peak = jnp.max(x, axis=-1, keepdims=True)                    # per-(b,c) peak
    out = jnp.where(x < peak * alpha, 0.0, x)                    # peak stimulator
    o_ref[...] = out.astype(o_ref.dtype)


def _rowmax_kernel(x_ref, peak_ref, *, hw, tk, compute_dtype):
    """Two-pass / pass 1: per-row max of relu(x); HW tiled (reduction last).

    peak_ref stays resident across the k axis (same output block index), so it
    doubles as the accumulator.  The ragged last HW tile is masked in-kernel.
    """
    k = pl.program_id(1)

    @pl.when(k == 0)
    def _():
        peak_ref[...] = jnp.zeros_like(peak_ref)                 # relu(x) >= 0

    x = jnp.maximum(x_ref[...].astype(compute_dtype), 0.0)
    if hw % tk != 0:
        # Last HW tile reaches past the array: out-of-bounds lanes are
        # unspecified, so mask them before they can inflate the row max.
        col = k * tk + jax.lax.broadcasted_iota(jnp.int32, x.shape, 1)
        x = jnp.where(col < hw, x, 0.0)
    peak_ref[...] = jnp.maximum(
        peak_ref[...], jnp.max(x, axis=-1, keepdims=True).astype(peak_ref.dtype))


def _threshold_kernel(peak_ref, x_ref, o_ref, *, alpha, compute_dtype):
    """Two-pass / pass 2: elementwise relu + threshold vs. precomputed peak.

    No tail masking needed: out-of-bounds lanes/rows of a partial block are
    never written back to HBM.
    """
    x = jnp.maximum(x_ref[...].astype(compute_dtype), 0.0)
    thr = (peak_ref[...] * alpha).astype(compute_dtype)          # (tm, 1)
    out = jnp.where(x < thr, 0.0, x)
    o_ref[...] = out.astype(o_ref.dtype)


# ---------------------------------------------------------------------------
# Wrapper
# ---------------------------------------------------------------------------

def pam_forward(x, alpha, *, target_block_bytes=None, max_fused_block_bytes=None,
                vmem_limit_bytes=None):
    """PAM forward. x: (B, C, H, W) float array. Returns same shape/dtype."""
    b, c, h, w = x.shape
    rows, hw = b * c, h * w
    dtype = x.dtype
    esize = jnp.dtype(dtype).itemsize
    row_mult = max(8, 32 // esize)                 # sublane packing: 8 f32, 16 bf16

    # bf16 VALUs are native on v6e/v7x and max/cmp/select are exact in bf16,
    # so keep the input precision for f32/bf16; upcast anything narrower.
    in_dt = jnp.dtype(dtype)
    compute_dtype = in_dt if in_dt in (jnp.dtype(jnp.float32), jnp.dtype(jnp.bfloat16)) \
        else jnp.dtype(jnp.float32)

    # Per-generation sizing from the actual VMEM capacity.
    vmem_cap = _vmem_capacity_bytes()
    if vmem_limit_bytes is None:
        vmem_limit_bytes = int(vmem_cap * 4 // 5)           # ~102 MiB v5e/v6e, ~51 MiB v7x
    if max_fused_block_bytes is None:
        max_fused_block_bytes = vmem_cap // 8               # 16 MiB / 8 MiB
    if target_block_bytes is None:
        target_block_bytes = max(2 << 20, vmem_cap // 16)   # 8 MiB / 4 MiB

    hw_p = _round_up(hw, 128)                     # physical lane footprint of a row
    x2 = x.reshape(rows, hw)                      # free: contiguous NCHW -> (B*C, HW)

    def pick_tm(budget_rows):
        tm = min(budget_rows, _round_up(rows, row_mult))
        # >= 2 row-blocks when possible so the "parallel" axis can feed both
        # TensorCores on v7x (harmless elsewhere).
        tm = min(tm, max(row_mult, _round_up(-(-rows // 2), row_mult)))
        tm = max(row_mult, tm)
        if tm > rows:                             # single full block ("equal dim" rule)
            tm = rows
        return tm

    # ----------------- single-pass path: a full spatial row fits the tile ----
    if row_mult * hw_p * esize <= max_fused_block_bytes:
        budget_rows = (target_block_bytes // (hw_p * esize)) // row_mult * row_mult
        tm = pick_tm(budget_rows)
        n_row_blocks = -(-rows // tm)
        block_bytes = tm * hw_p * esize

        out = pl.pallas_call(
            functools.partial(_pam_fused_kernel, alpha=float(alpha),
                              compute_dtype=compute_dtype),
            out_shape=jax.ShapeDtypeStruct((rows, hw), dtype),
            grid_spec=pltpu.PrefetchScalarGridSpec(
                num_scalar_prefetch=0,
                grid=(n_row_blocks,),
                in_specs=[pl.BlockSpec((tm, hw), lambda i: (i, 0))],
                out_specs=pl.BlockSpec((tm, hw), lambda i: (i, 0)),
            ),
            compiler_params=pltpu.CompilerParams(
                dimension_semantics=("parallel",),
                vmem_limit_bytes=int(min(max(6 * block_bytes, 16 << 20),
                                         vmem_limit_bytes)),
            ),
            cost_estimate=pl.CostEstimate(
                flops=3 * rows * hw, transcendentals=0,
                bytes_accessed=2 * rows * hw * esize),
        )(x2)
        return out.reshape(b, c, h, w)

    # ----------------- two-pass path: row-max reduce, then threshold ---------
    tm = pick_tm(128)                             # denser (tm,1) peak store, modest tk
    budget_tk = max(128, (target_block_bytes // (tm * esize)) // 128 * 128)
    tk = min(budget_tk, hw_p)
    if tk > hw:
        tk = hw                                   # single full-width block
    n_row_blocks = -(-rows // tm)
    n_k_blocks = -(-hw // tk)
    block_bytes = tm * _round_up(tk, 128) * esize
    vmem_limit = int(min(max(6 * block_bytes, 16 << 20), vmem_limit_bytes))

    peaks = pl.pallas_call(
        functools.partial(_rowmax_kernel, hw=hw, tk=tk, compute_dtype=compute_dtype),
        out_shape=jax.ShapeDtypeStruct((rows, 1), jnp.float32),
        grid_spec=pltpu.PrefetchScalarGridSpec(
            num_scalar_prefetch=0,
            grid=(n_row_blocks, n_k_blocks),
            in_specs=[pl.BlockSpec((tm, tk), lambda i, k: (i, k))],
            out_specs=pl.BlockSpec((tm, 1), lambda i, k: (i, 0)),
        ),
        compiler_params=pltpu.CompilerParams(
            dimension_semantics=("parallel", "arbitrary"),
            vmem_limit_bytes=vmem_limit,
        ),
        cost_estimate=pl.CostEstimate(
            flops=2 * rows * hw, transcendentals=0,
            bytes_accessed=rows * hw * esize + rows * 4),
    )(x2)

    out = pl.pallas_call(
        functools.partial(_threshold_kernel, alpha=float(alpha),
                          compute_dtype=compute_dtype),
        out_shape=jax.ShapeDtypeStruct((rows, hw), dtype),
        grid_spec=pltpu.PrefetchScalarGridSpec(
            num_scalar_prefetch=0,
            grid=(n_row_blocks, n_k_blocks),
            in_specs=[pl.BlockSpec((tm, 1), lambda i, k: (i, 0)),
                      pl.BlockSpec((tm, tk), lambda i, k: (i, k))],
            out_specs=pl.BlockSpec((tm, tk), lambda i, k: (i, k)),
        ),
        compiler_params=pltpu.CompilerParams(
            dimension_semantics=("parallel", "parallel"),
            vmem_limit_bytes=vmem_limit,
        ),
        cost_estimate=pl.CostEstimate(
            flops=3 * rows * hw, transcendentals=0,
            bytes_accessed=2 * rows * hw * esize + rows * 4),
    )(peaks, x2)
    return out.reshape(b, c, h, w)


# ---------------------------------------------------------------------------
# Reference + self-test
# ---------------------------------------------------------------------------

def pam_reference(x, alpha):
    """Pure-JAX reference mirroring the PyTorch forward."""
    x = jnp.maximum(x, 0.0)
    peak = jnp.max(x, axis=(2, 3), keepdims=True)
    boundary = x < peak * alpha
    return jnp.where(boundary, jnp.zeros_like(x), x)


if __name__ == "__main__":
    # PAM has no learnable parameters; alpha is a scalar hyperparameter.
    alpha = 0.5
    key = jax.random.PRNGKey(0)

    # 1) Aligned shape -> fused path (no padding, no slicing).
    x = jax.random.normal(key, (2, 4, 16, 16), dtype=jnp.float32)
    ref = pam_reference(x, alpha)
    out = jax.block_until_ready(pam_forward(x, alpha))
    assert out.shape == x.shape
    assert jnp.allclose(out, ref, atol=1e-6), "fused-path mismatch vs reference"

    # 2) Ragged rows + ragged lanes -> fused path with partial row block and
    #    full-width (non-128-multiple) lane block.
    k2 = jax.random.split(key, 2)[1]
    xr = jax.random.normal(k2, (3, 4, 7, 9), dtype=jnp.float32)
    assert jnp.allclose(jax.block_until_ready(pam_forward(xr, alpha)),
                        pam_reference(xr, alpha), atol=1e-6), \
        "fused-path (ragged) mismatch vs reference"

    # 3) Force the two-pass (large-HW) path on the aligned shape.
    out2 = jax.block_until_ready(pam_forward(x, alpha, max_fused_block_bytes=0))
    assert jnp.allclose(out2, ref, atol=1e-6), "two-pass-path mismatch vs reference"

    # 4) Force the two-pass path with a ragged, multi-tile HW axis so the
    #    in-kernel tail mask of the row-max reduction is exercised.
    k3 = jax.random.split(key, 3)[2]
    xt = jax.random.normal(k3, (2, 4, 10, 20), dtype=jnp.float32)  # hw=200, tk=128
    out3 = jax.block_until_ready(
        pam_forward(xt, alpha, max_fused_block_bytes=0, target_block_bytes=4096))
    assert jnp.allclose(out3, pam_reference(xt, alpha), atol=1e-6), \
        "two-pass-path (ragged HW) mismatch vs reference"

    print("KERNEL_OK")
</pallas_src>

<mosaic_0001>
module attributes {stable_mosaic.version = 11 : i64} {
  func.func @_pam_fused_kernel(%arg0: i32, %arg1: memref<8x256xf32, #tpu.memory_space<vmem>>, %arg2: memref<8x256xf32, #tpu.memory_space<vmem>>) attributes {dimension_semantics = [#tpu.dimension_semantics<parallel>], iteration_bounds = array<i64: 1>, scalar_prefetch = 0 : i64, scratch_operands = 0 : i64, tpu.core_type = #tpu.core_type<tc>, window_params = [{transform_indices = @transform_0, window_bounds = array<i64: 8, 256>}, {transform_indices = @transform_1, window_bounds = array<i64: 8, 256>}]} {
    %c0 = arith.constant 0 : index
    %c0_0 = arith.constant 0 : index
    %0 = vector.load %arg1[%c0, %c0_0] : memref<8x256xf32, #tpu.memory_space<vmem>>, vector<8x256xf32>
    %cst = arith.constant 0.000000e+00 : f32
    %1 = vector.broadcast %cst : f32 to vector<8x256xf32>
    %2 = arith.maximumf %0, %1 : vector<8x256xf32>
    %cst_1 = arith.constant dense<0xFF800000> : vector<8xf32>
    %3 = vector.multi_reduction <maximumf>, %2, %cst_1 [1] : vector<8x256xf32> to vector<8xf32>
    %4 = vector.shape_cast %3 : vector<8xf32> to vector<8x1xf32>
    %cst_2 = arith.constant 5.000000e-01 : f32
    %5 = vector.broadcast %cst_2 : f32 to vector<8x1xf32>
    %6 = arith.mulf %4, %5 : vector<8x1xf32>
    %7 = vector.broadcast %6 : vector<8x1xf32> to vector<8x256xf32>
    %8 = arith.cmpf olt, %2, %7 : vector<8x256xf32>
    %cst_3 = arith.constant 0.000000e+00 : f32
    %9 = vector.broadcast %cst_3 : f32 to vector<8x256xf32>
    %10 = arith.select %8, %9, %2 : vector<8x256xi1>, vector<8x256xf32>
    %c0_4 = arith.constant 0 : index
    %c0_5 = arith.constant 0 : index
    %11 = vector.load %arg2[%c0_4, %c0_5] : memref<8x256xf32, #tpu.memory_space<vmem>>, vector<8x256xf32>
    tpu.vector_store %arg2[%c0_4, %c0_5], %10 {strides = array<i32>} : memref<8x256xf32, #tpu.memory_space<vmem>>, vector<8x256xf32>,
    return
  }
  func.func @transform_0(%arg0: i32) -> (i32, i32) {
    %c0_i32 = arith.constant 0 : i32
    %c0_i32_0 = arith.constant 0 : i32
    return %arg0, %c0_i32 : i32, i32
  }
  func.func @transform_1(%arg0: i32) -> (i32, i32) {
    %c0_i32 = arith.constant 0 : i32
    %c0_i32_0 = arith.constant 0 : i32
    return %arg0, %c0_i32 : i32, i32
  }
}

</mosaic_0001>

<llo_original>
// kernel: tpu_custom_call.1
$region0: #{tpu_custom_call.1}
  #allocation0 [shape = 'u32[]', space=smem, size = 0x4, offset = 0x4, fixed_abs, tag = 'smem constant byte address 0x4 - core index']
  #allocation1 [shape = 'u32[144,128]{1,0:T(1,128)}', space=vmem, size = 0x12000, scoped, tag = 'internal scratch']
  %s0 = inlined_call_operand.hbm [shape: f32[8,256], index: 0, kind: input, shape index: {}]
  %s1 = inlined_call_operand.hbm [shape: f32[8,256], index: 1, kind: output, shape index: {}]
  %s2 = sld [smem:[#allocation0]]
  $region18: #{tpu_custom_call.1} parent=0
    _
  %s4 = ssub.s32 1, %s2
  %s5 = scalar_select 0, %s4, %s2
  $region1: #{tpu_custom_call.1} parent=0
    #allocation2 [shape = 'u8[8192]{0}', space=vmem, size = 0x2000, scoped, tag = 'input window, operand 0, single buffered']
    #allocation3 [shape = 's32[1]{0}', space=sflag, size = 0x4, scoped, tag = 'scoped memory for tpu_custom_call.1']
    #allocation4 [shape = 's32[1]{0}', space=sflag, size = 0x4, scoped, tag = 'scoped memory for tpu_custom_call.1']
    #allocation5 [shape = 'u8[8192]{0}', space=vmem, size = 0x2000, scoped, tag = 'output window, operand 0, single buffered']
    %6 = vsyncpa [#allocation3], 0
    %7 = vsyncpa [#allocation4], 0
    // Predicated region
    $region2: #{tpu_custom_call.1} parent=1 // pred_check
      _
    $region3: #{tpu_custom_call.1} parent=1 // pred_check_branch
      %9 = sbr.rel (0) target = $region5
    $region4: #{tpu_custom_call.1} parent=1 // pred_region
      %s11 = ssub.s32 256, 256
      %12 = vsyncadd [#allocation3], %s11
      %s14 = sshll.u32 [#allocation2], 4
      %s15 = int_to_ptr.vmem [resolvable:$true] %s14
      %17 = dma.hbm_to_vmem [thread:$0]  %s0, 256, %s15, [#allocation3]
    $region5: #{tpu_custom_call.1} parent=1 // pred_fallthru
      _
    // Predicated region
    $region6: #{tpu_custom_call.1} parent=1 // pred_check
      _
    $region7: #{tpu_custom_call.1} parent=1 // pred_check_branch
      %19 = sbr.rel (0) target = $region9
    $region8: #{tpu_custom_call.1} parent=1 // pred_region
      %20 = dma.done [#allocation3], 256
    $region9: #{tpu_custom_call.1} parent=1 // pred_fallthru
      _
    %v21 = vld [vmem:[#allocation2] sm:$0xff]
    %v22 = vld [vmem:[#allocation2 + $0x8] sm:$0xff]
    %v23 = vmax.f32 %v21, 0.0
    %v24 = vmax.f32 %v22, 0.0
    %v25 = vmax.f32 %v23, %v24
    %26 = vmax.xlane.f32.xlu0 %v25
    %v27 = vpop.xlane.xlu0 %26
    %v28 = vmul.f32 %v27, 0.5
    %vm29 = vcmp.lt.f32.partialorder %v23, %v28
    %vm30 = vcmp.lt.f32.partialorder %v24, %v28
    %v31 = vsel %vm29, 0.0, %v23
    %v32 = vsel %vm30, 0.0, %v24
    %33 = vst [vmem:[#allocation5] sm:$0xff] %v31
    %34 = vst [vmem:[#allocation5 + $0x8] sm:$0xff] %v32
    // Predicated region
    $region10: #{tpu_custom_call.1} parent=1 // pred_check
      _
    $region11: #{tpu_custom_call.1} parent=1 // pred_check_branch
      %36 = sbr.rel (0) target = $region13
    $region12: #{tpu_custom_call.1} parent=1 // pred_region
      %s38 = ssub.s32 256, 256
      %39 = vsyncadd [#allocation4], %s38
      %s41 = sshll.u32 [#allocation5], 4
      %s42 = int_to_ptr.vmem [resolvable:$true] %s41
      %44 = dma.vmem_to_hbm [thread:$0]  %s42, 256, %s1, [#allocation4]
    $region13: #{tpu_custom_call.1} parent=1 // pred_fallthru
      _
    // Predicated region
    $region14: #{tpu_custom_call.1} parent=1 // pred_check
      _
    $region15: #{tpu_custom_call.1} parent=1 // pred_check_branch
      %46 = sbr.rel (0) target = $region17
    $region16: #{tpu_custom_call.1} parent=1 // pred_region
      %47 = dma.done [#allocation4], 256
    $region17: #{tpu_custom_call.1} parent=1 // pred_fallthru
      _
    %48 = vsyncpa [#allocation3], 1
    %49 = vsyncpa [#allocation4], 1

</llo_original>
